<compile_context>
chip_gen: v7x
topology: tpu7x:2x2x1
jax: 0.10.0
libtpu: 0.0.40
codegen_flags: <defaults>
</compile_context>

<pallas_src>
import jax
import jax.numpy as jnp
from jax.experimental import pallas as pl
from jax.experimental.pallas import tpu as pltpu


# --------------------------------------------------------------------------- #
# Kernels
# --------------------------------------------------------------------------- #
def _bias_gemm_kernel(x_ref, w_ref, b_ref, o_ref, acc_ref):
    """out = x @ w + b, K streamed over grid axis 2 with an f32 accumulator."""
    @pl.when(pl.program_id(2) == 0)
    def _():
        acc_ref[...] = jnp.zeros_like(acc_ref)

    acc_ref[...] += jnp.dot(x_ref[...], w_ref[...],
                            preferred_element_type=jnp.float32)

    @pl.when(pl.program_id(2) == pl.num_programs(2) - 1)
    def _():
        o_ref[...] = (acc_ref[...] + b_ref[...]).astype(o_ref.dtype)


def _bias_gemm_single_k_kernel(x_ref, w_ref, b_ref, o_ref):
    """Fast path when the whole K dim fits a single tile: no scratch, no phases."""
    o_ref[...] = (jnp.dot(x_ref[...], w_ref[...],
                          preferred_element_type=jnp.float32)
                  + b_ref[...]).astype(o_ref.dtype)


# --------------------------------------------------------------------------- #
# Parameter preparation (ONE-TIME — keep out of the per-step forward path)
# --------------------------------------------------------------------------- #
def _round_up(x, m):
    return ((x + m - 1) // m) * m


def _choose_tile(dim, cap):
    """Return (padded_dim, tile). cap must be a multiple of 128.

    Prefers no extra padding with the largest >=256 multiple-of-128 divisor
    <= cap; for awkward (prime-ish multiple-of-128) dims it pads up to the cap
    instead of degenerating to many tiny 128-wide grid steps.
    """
    dim128 = _round_up(dim, 128)
    if dim128 <= cap:
        return dim128, dim128
    for t in range(cap, 255, -128):
        if dim128 % t == 0:
            return dim128, t
    return _round_up(dim128, cap), cap


def prepare_masked_linear_params(weight, bias, mask, *,
                                 weight_dtype=jnp.bfloat16,
                                 tk_cap=1024, tn_cap=512):
    """weight: (Out, In) torch layout; bias: (Out,); mask: (In,), (1, In) or (B, In).

    Static (broadcastable) masks are folded into the pre-transposed weight in
    f32 BEFORE the bf16 cast, so the hot path is a pure bias-add GEMM.
    """
    out_channels, in_channels = weight.shape
    mask = jnp.asarray(mask, dtype=jnp.float32)
    folded = (mask.ndim == 1) or (mask.ndim == 2 and mask.shape[0] == 1)

    in_pad, tk = _choose_tile(in_channels, tk_cap)
    out_pad, tn = _choose_tile(out_channels, tn_cap)

    w_t = weight.astype(jnp.float32).T                      # (In, Out), one-time
    if folded:
        # (x * m) @ W.T == x @ (diag(m) @ W.T): fold the static mask into W.
        w_t = mask.reshape(-1)[:, None] * w_t
    w_pad = jnp.pad(w_t, ((0, in_pad - in_channels), (0, out_pad - out_channels)))
    w_pad = w_pad.astype(weight_dtype)                      # bf16: halves weight HBM bytes
    # TODO(synk): optional fp8 weight storage (+ per-channel dequant in the
    # finalize step) for v7x would halve weight bytes again.

    b_pad = jnp.pad(bias.astype(jnp.float32).reshape(1, -1),
                    ((0, 0), (0, out_pad - out_channels)))

    return {
        "w": w_pad,                        # (In_pad, Out_pad) lane-dense, bf16
        "b": b_pad,                        # (1, Out_pad) f32
        "folded": folded,
        "mask": None if folded else mask,  # only kept for per-sample masks
        "in_channels": in_channels,
        "out_channels": out_channels,
        "in_pad": in_pad,
        "out_pad": out_pad,
        "tk": tk,
        "tn": tn,
        "compute_dtype": weight_dtype,
    }


# --------------------------------------------------------------------------- #
# Forward
# --------------------------------------------------------------------------- #
def masked_layer_forward(x, params):
    B, in_channels = x.shape
    assert in_channels == params["in_channels"]
    in_pad, out_pad = params["in_pad"], params["out_pad"]
    out_channels = params["out_channels"]
    tk, tn = params["tk"], params["tn"]
    cdt = params["compute_dtype"]
    out_dtype = x.dtype

    # ---- batch padding / tm selection (minimize pad waste) -----------------
    if B <= 512:
        B_pad = _round_up(B, 8)
        tm = B_pad                                 # single M block, <8 pad rows
    else:
        # pick tm from {512,256,128} minimizing pad rows (ties -> larger tile);
        # larger tm also halves weight re-streaming across grid_i.
        tm = min((512, 256, 128), key=lambda t: (_round_up(B, t) - B, -t))
        B_pad = _round_up(B, tm)

    # ---- per-sample (B, In) mask: fold into x here (fuses with pad/cast) ---
    if not params["folded"]:
        x = x * jnp.broadcast_to(params["mask"], (B, in_channels))

    x = x.astype(cdt)                              # bf16 MXU path, half DMA bytes
    if (B_pad != B) or (in_pad != in_channels):
        x = jnp.pad(x, ((0, B_pad - B), (0, in_pad - in_channels)))

    # ---- v7x: guarantee >=2 parallel blocks when the layer is non-trivial --
    if (B_pad // tm) * (out_pad // tn) == 1:
        if tn >= 256:
            tn //= 2
        elif tm >= 16 and tm % 16 == 0:
            tm //= 2

    gi, gj, gk = B_pad // tm, out_pad // tn, in_pad // tk
    grid = (gi, gj, gk)

    x_spec = pl.BlockSpec((tm, tk), lambda i, j, k: (i, k))
    w_spec = pl.BlockSpec((tk, tn), lambda i, j, k: (k, j))
    b_spec = pl.BlockSpec((1, tn), lambda i, j, k: (0, j))
    o_spec = pl.BlockSpec((tm, tn), lambda i, j, k: (i, j))

    if gk == 1:
        kernel = _bias_gemm_single_k_kernel
        scratch = []
    else:
        kernel = _bias_gemm_kernel
        scratch = [pltpu.VMEM((tm, tn), jnp.float32)]

    out_padded = pl.pallas_call(
        kernel,
        out_shape=jax.ShapeDtypeStruct((B_pad, out_pad), out_dtype),
        grid_spec=pltpu.PrefetchScalarGridSpec(
            num_scalar_prefetch=0,
            grid=grid,
            in_specs=[x_spec, w_spec, b_spec],
            out_specs=o_spec,
            scratch_shapes=scratch,
        ),
        compiler_params=pltpu.CompilerParams(
            dimension_semantics=("parallel", "parallel", "arbitrary"),
            # Max working set (tm=512, tk=1024, tn=512, bf16 operands, f32 acc)
            # is ~7 MiB double-buffered; 32 MiB covers every generation
            # (raises v5e's 16 MiB default, within v7x's 64 MiB physical).
            vmem_limit_bytes=32 * 1024 * 1024,
        ),
    )(x, params["w"], params["b"])

    if (B_pad != B) or (out_pad != out_channels):
        out_padded = out_padded[:B, :out_channels]
    return out_padded


# --------------------------------------------------------------------------- #
# Demo / self-check
# --------------------------------------------------------------------------- #
if __name__ == "__main__":
    batch = 8
    in_channels = 32
    out_channels = 32

    key = jax.random.PRNGKey(0)
    kx, km, kw, kb, km2 = jax.random.split(key, 5)

    x = jax.random.normal(kx, (batch, in_channels), dtype=jnp.float32)

    # Pruning-style binary mask over input features (FP defense usage).
    mask = (jax.random.uniform(km, (in_channels,)) > 0.3).astype(jnp.float32)

    # nn.Linear default init: U(-1/sqrt(in), 1/sqrt(in)).
    bound = 1.0 / (in_channels ** 0.5)
    weight = jax.random.uniform(kw, (out_channels, in_channels),
                                minval=-bound, maxval=bound, dtype=jnp.float32)
    bias = jax.random.uniform(kb, (out_channels,),
                              minval=-bound, maxval=bound, dtype=jnp.float32)

    # Path 1: broadcastable mask -> folded into the bf16 weight at prep time.
    params = prepare_masked_linear_params(weight, bias, mask)
    out = jax.block_until_ready(masked_layer_forward(x, params))
    assert out.shape == (batch, out_channels)
    # Reference with matching bf16 casts (mask is 0/1 so folding order is exact).
    ref = jnp.dot((x * mask[None, :]).astype(jnp.bfloat16),
                  weight.T.astype(jnp.bfloat16),
                  preferred_element_type=jnp.float32) + bias[None, :]
    assert jnp.allclose(out, ref, atol=1e-3, rtol=1e-3)
    # Loose check against full-f32 math as well.
    ref_f32 = (x * mask[None, :]) @ weight.T + bias[None, :]
    assert jnp.allclose(out, ref_f32, atol=5e-2, rtol=5e-2)

    # Path 2: genuine per-sample (B, In) mask -> folded into x in the wrapper.
    mask2 = (jax.random.uniform(km2, (batch, in_channels)) > 0.3).astype(jnp.float32)
    params2 = prepare_masked_linear_params(weight, bias, mask2)
    out2 = jax.block_until_ready(masked_layer_forward(x, params2))
    ref2 = jnp.dot((x * mask2).astype(jnp.bfloat16),
                   weight.T.astype(jnp.bfloat16),
                   preferred_element_type=jnp.float32) + bias[None, :]
    assert jnp.allclose(out2, ref2, atol=1e-3, rtol=1e-3)

    print("KERNEL_OK")
</pallas_src>

<mosaic_0001>
module attributes {stable_mosaic.version = 11 : i64} {
  func.func @_bias_gemm_single_k_kernel(%arg0: i32, %arg1: i32, %arg2: i32, %arg3: memref<8x128xbf16, #tpu.memory_space<vmem>>, %arg4: memref<128x128xbf16, #tpu.memory_space<vmem>>, %arg5: memref<1x128xf32, #tpu.memory_space<vmem>>, %arg6: memref<8x128xf32, #tpu.memory_space<vmem>>) attributes {dimension_semantics = [#tpu.dimension_semantics<parallel>, #tpu.dimension_semantics<parallel>, #tpu.dimension_semantics<arbitrary>], iteration_bounds = array<i64: 1, 1, 1>, scalar_prefetch = 0 : i64, scratch_operands = 0 : i64, tpu.core_type = #tpu.core_type<tc>, window_params = [{transform_indices = @transform_0, window_bounds = array<i64: 8, 128>}, {transform_indices = @transform_1, window_bounds = array<i64: 128, 128>}, {transform_indices = @transform_2, window_bounds = array<i64: 1, 128>}, {transform_indices = @transform_3, window_bounds = array<i64: 8, 128>}]} {
    %c0 = arith.constant 0 : index
    %c0_0 = arith.constant 0 : index
    %0 = vector.load %arg3[%c0, %c0_0] : memref<8x128xbf16, #tpu.memory_space<vmem>>, vector<8x128xbf16>
    %c0_1 = arith.constant 0 : index
    %c0_2 = arith.constant 0 : index
    %1 = vector.load %arg4[%c0_1, %c0_2] : memref<128x128xbf16, #tpu.memory_space<vmem>>, vector<128x128xbf16>
    %cst = arith.constant dense<0.000000e+00> : vector<8x128xf32>
    %2 = tpu.matmul %0, %1, %cst {dimension_numbers = #tpu.dot_dimension_numbers<[1], [0], [0], [1], [0, 0, 1, 1], [], []>} : vector<8x128xbf16>, vector<128x128xbf16>, vector<8x128xf32> -> vector<8x128xf32>
    %c0_3 = arith.constant 0 : index
    %c0_4 = arith.constant 0 : index
    %3 = vector.load %arg5[%c0_3, %c0_4] : memref<1x128xf32, #tpu.memory_space<vmem>>, vector<1x128xf32>
    %4 = vector.broadcast %3 : vector<1x128xf32> to vector<8x128xf32>
    %5 = arith.addf %2, %4 : vector<8x128xf32>
    %c0_5 = arith.constant 0 : index
    %c0_6 = arith.constant 0 : index
    %6 = vector.load %arg6[%c0_5, %c0_6] : memref<8x128xf32, #tpu.memory_space<vmem>>, vector<8x128xf32>
    tpu.vector_store %arg6[%c0_5, %c0_6], %5 {strides = array<i32>} : memref<8x128xf32, #tpu.memory_space<vmem>>, vector<8x128xf32>,
    return
  }
  func.func @transform_0(%arg0: i32, %arg1: i32, %arg2: i32) -> (i32, i32) {
    %c0_i32 = arith.constant 0 : i32
    return %arg0, %arg2 : i32, i32
  }
  func.func @transform_1(%arg0: i32, %arg1: i32, %arg2: i32) -> (i32, i32) {
    %c0_i32 = arith.constant 0 : i32
    return %arg2, %arg1 : i32, i32
  }
  func.func @transform_2(%arg0: i32, %arg1: i32, %arg2: i32) -> (i32, i32) {
    %c0_i32 = arith.constant 0 : i32
    %c0_i32_0 = arith.constant 0 : i32
    return %c0_i32, %arg1 : i32, i32
  }
  func.func @transform_3(%arg0: i32, %arg1: i32, %arg2: i32) -> (i32, i32) {
    %c0_i32 = arith.constant 0 : i32
    return %arg0, %arg1 : i32, i32
  }
}

</mosaic_0001>

<llo_original>
// kernel: tpu_custom_call.1
$region0: #{tpu_custom_call.1}
  #allocation0 [shape = 'u32[]', space=smem, size = 0x4, offset = 0x4, fixed_abs, tag = 'smem constant byte address 0x4 - core index']
  #allocation1 [shape = 'u32[144,128]{1,0:T(1,128)}', space=vmem, size = 0x12000, scoped, tag = 'internal scratch']
  %s0 = inlined_call_operand.hbm [shape: bf16[8,128], index: 0, kind: input, shape index: {}]
  %s1 = inlined_call_operand.hbm [shape: bf16[128,128], index: 1, kind: input, shape index: {}]
  %s2 = inlined_call_operand.vmem [shape: f32[1,128], index: 2, kind: input, shape index: {}]
  %s3 = inlined_call_operand.hbm [shape: f32[8,128], index: 3, kind: output, shape index: {}]
  %s4 = sld [smem:[#allocation0]]
  $region30: #{tpu_custom_call.1} parent=0
    _
  %s6 = ssub.s32 1, %s4
  %s7 = scalar_select 0, %s6, %s4
  $region1: #{tpu_custom_call.1} parent=0
    #allocation2 [shape = 'u8[2048]{0}', space=vmem, size = 0x800, scoped, tag = 'input window, operand 0, single buffered']
    #allocation3 [shape = 's32[1]{0}', space=sflag, size = 0x4, scoped, tag = 'scoped memory for tpu_custom_call.1']
    #allocation4 [shape = 's32[1]{0}', space=sflag, size = 0x4, scoped, tag = 'scoped memory for tpu_custom_call.1']
    #allocation5 [shape = 'u8[32768]{0}', space=vmem, size = 0x8000, scoped, tag = 'input window, operand 1, single buffered']
    #allocation6 [shape = 's32[1]{0}', space=sflag, size = 0x4, scoped, tag = 'scoped memory for tpu_custom_call.1']
    #allocation7 [shape = 'u8[4096]{0}', space=vmem, size = 0x1000, scoped, tag = 'output window, operand 0, single buffered']
    %8 = vsyncpa [#allocation3], 0
    %9 = vsyncpa [#allocation6], 0
    %10 = vsyncpa [#allocation4], 0
    // Predicated region
    $region2: #{tpu_custom_call.1} parent=1 // pred_check
      _
    $region3: #{tpu_custom_call.1} parent=1 // pred_check_branch
      %12 = sbr.rel (0) target = $region5
    $region4: #{tpu_custom_call.1} parent=1 // pred_region
      %s14 = ssub.s32 64, 64
      %15 = vsyncadd [#allocation3], %s14
      %s17 = sshll.u32 [#allocation2], 4
      %s18 = int_to_ptr.vmem [resolvable:$true] %s17
      %20 = dma.hbm_to_vmem [thread:$0]  %s0, 64, %s18, [#allocation3]
    $region5: #{tpu_custom_call.1} parent=1 // pred_fallthru
      _
    // Predicated region
    $region6: #{tpu_custom_call.1} parent=1 // pred_check
      _
    $region7: #{tpu_custom_call.1} parent=1 // pred_check_branch
      %22 = sbr.rel (0) target = $region9
    $region8: #{tpu_custom_call.1} parent=1 // pred_region
      %s24 = ssub.s32 1024, 1024
      %25 = vsyncadd [#allocation6], %s24
      %s26 = sshll.u32 [#allocation5], 4
      %s27 = int_to_ptr.vmem [resolvable:$true] %s26
      %32 = dma.hbm_to_vmem [thread:$0]  %s1, 1024, %s27, [#allocation6], 64, 64, 4
    $region9: #{tpu_custom_call.1} parent=1 // pred_fallthru
      _
    // Predicated region
    $region10: #{tpu_custom_call.1} parent=1 // pred_check
      _
    $region11: #{tpu_custom_call.1} parent=1 // pred_check_branch
      %34 = sbr.rel (0) target = $region13
    $region12: #{tpu_custom_call.1} parent=1 // pred_region
      _
    $region13: #{tpu_custom_call.1} parent=1 // pred_fallthru
      _
    // Predicated region
    $region14: #{tpu_custom_call.1} parent=1 // pred_check
      _
    $region15: #{tpu_custom_call.1} parent=1 // pred_check_branch
      %36 = sbr.rel (0) target = $region17
    $region16: #{tpu_custom_call.1} parent=1 // pred_region
      %37 = dma.done [#allocation3], 64
    $region17: #{tpu_custom_call.1} parent=1 // pred_fallthru
      _
    // Predicated region
    $region18: #{tpu_custom_call.1} parent=1 // pred_check
      _
    $region19: #{tpu_custom_call.1} parent=1 // pred_check_branch
      %39 = sbr.rel (0) target = $region21
    $region20: #{tpu_custom_call.1} parent=1 // pred_region
      %40 = dma.done [#allocation6], 1024
    $region21: #{tpu_custom_call.1} parent=1 // pred_fallthru
      _
    %v42 = vld [vmem:[#allocation2] sm:$0xf]
    %v43 = vld [vmem:[#allocation5] sm:$0xf]
    %v44 = vld [vmem:[#allocation5 + $0x4] sm:$0xf]
    %v45 = vld [vmem:[#allocation5 + $0x8] sm:$0xf]
    %v46 = vld [vmem:[#allocation5 + $0xc] sm:$0xf]
    %v47 = vld [vmem:[#allocation5 + $0x10] sm:$0xf]
    %v48 = vld [vmem:[#allocation5 + $0x14] sm:$0xf]
    %v49 = vld [vmem:[#allocation5 + $0x18] sm:$0xf]
    %v50 = vld [vmem:[#allocation5 + $0x1c] sm:$0xf]
    %v51 = vld [vmem:[#allocation5 + $0x20] sm:$0xf]
    %v52 = vld [vmem:[#allocation5 + $0x24] sm:$0xf]
    %v53 = vld [vmem:[#allocation5 + $0x28] sm:$0xf]
    %v54 = vld [vmem:[#allocation5 + $0x2c] sm:$0xf]
    %v55 = vld [vmem:[#allocation5 + $0x30] sm:$0xf]
    %v56 = vld [vmem:[#allocation5 + $0x34] sm:$0xf]
    %v57 = vld [vmem:[#allocation5 + $0x38] sm:$0xf]
    %v58 = vld [vmem:[#allocation5 + $0x3c] sm:$0xf]
    %v59 = vld [vmem:[%s2] sm:$0x1]
    %v61 = vlaneseq
    %v62 = vshrl.u32 %v61, 7
    %v63 = vsub.s32 0, %v62
    %v64 = vrot.slane %v59, %v63
    %v82 = vunpack.c.l.b16 %v43
    %v83 = vunpack.c.l.b16 %v44
    %v84 = vunpack.c.l.b16 %v45
    %v85 = vunpack.c.l.b16 %v46
    %v86 = vunpack.c.l.b16 %v47
    %v87 = vunpack.c.l.b16 %v48
    %v88 = vunpack.c.l.b16 %v49
    %v89 = vunpack.c.l.b16 %v50
    %v90 = vunpack.c.l.b16 %v51
    %v91 = vunpack.c.l.b16 %v52
    %v92 = vunpack.c.l.b16 %v53
    %v93 = vunpack.c.l.b16 %v54
    %v94 = vunpack.c.l.b16 %v55
    %v95 = vunpack.c.l.b16 %v56
    %v96 = vunpack.c.l.b16 %v57
    %v97 = vunpack.c.l.b16 %v58
    %v98 = vpack.c.b16 %v83, %v82
    %v99 = vpack.c.b16 %v85, %v84
    %v100 = vpack.c.b16 %v87, %v86
    %v101 = vpack.c.b16 %v89, %v88
    %v102 = vpack.c.b16 %v91, %v90
    %v103 = vpack.c.b16 %v93, %v92
    %v104 = vpack.c.b16 %v95, %v94
    %v105 = vpack.c.b16 %v97, %v96
    %114 = vmatprep.subr.bf16.mxu0 0
    %115 = vmatpush1.bf16.msra.mxu0 %v98
    %116 = vmatprep.subr.bf16.mxu0 0
    %117 = vmatpush1.bf16.msra.mxu0 %v99
    %118 = vmatprep.subr.bf16.mxu0 0
    %119 = vmatpush1.bf16.msra.mxu0 %v100
    %120 = vmatprep.subr.bf16.mxu0 0
    %121 = vmatpush1.bf16.msra.mxu0 %v101
    %122 = vmatprep.subr.bf16.mxu0 0
    %123 = vmatpush1.bf16.msra.mxu0 %v102
    %124 = vmatprep.subr.bf16.mxu0 0
    %125 = vmatpush1.bf16.msra.mxu0 %v103
    %126 = vmatprep.subr.bf16.mxu0 0
    %127 = vmatpush1.bf16.msra.mxu0 %v104
    %128 = vmatprep.subr.bf16.mxu0 0
    %129 = vmatpush1.bf16.msra.mxu0 %v105
    %130 = vmatprep.subr.bf16.mxu0 0
    %131 = vmatpush1.bf16.msra.mxu0 0
    %132 = vmatprep.subr.bf16.mxu0 0
    %133 = vmatpush1.bf16.msra.mxu0 0
    %134 = vmatprep.subr.bf16.mxu0 0
    %135 = vmatpush1.bf16.msra.mxu0 0
    %136 = vmatprep.subr.bf16.mxu0 0
    %137 = vmatpush1.bf16.msra.mxu0 0
    %138 = vmatprep.subr.bf16.mxu0 0
    %139 = vmatpush1.bf16.msra.mxu0 0
    %140 = vmatprep.subr.bf16.mxu0 0
    %141 = vmatpush1.bf16.msra.mxu0 0
    %142 = vmatprep.subr.bf16.mxu0 0
    %143 = vmatpush1.bf16.msra.mxu0 0
    %144 = vmatprep.subr.bf16.mxu0 0
    %145 = vmatpush1.bf16.msra.mxu0 0
    %146 = vmatprep.mubr.bf16.mxu0 0
    %147 = vmatmul.mubr.bf16.gmra.mrb[0].mxu0 %v42
    %v148 = vpop.f32.mrb[0].mxu0
    %v149 = vadd.f32 %v64, %v148
    %v150 = vpop.f32.mrb[0].mxu0
    %v151 = vpop.f32.mrb[0].mxu0
    %v152 = vpop.f32.mrb[0].mxu0
    %153 = vdwg.mxu0
    %154 = vst [vmem:[#allocation7] sm:$0xff] %v149
    // Predicated region
    $region22: #{tpu_custom_call.1} parent=1 // pred_check
      _
    $region23: #{tpu_custom_call.1} parent=1 // pred_check_branch
      %156 = sbr.rel (0) target = $region25
    $region24: #{tpu_custom_call.1} parent=1 // pred_region
      %s158 = ssub.s32 128, 128
      %159 = vsyncadd [#allocation4], %s158
      %s161 = sshll.u32 [#allocation7], 4
      %s162 = int_to_ptr.vmem [resolvable:$true] %s161
      %164 = dma.vmem_to_hbm [thread:$0]  %s162, 128, %s3, [#allocation4]
    $region25: #{tpu_custom_call.1} parent=1 // pred_fallthru
      _
    // Predicated region
    $region26: #{tpu_custom_call.1} parent=1 // pred_check
      _
    $region27: #{tpu_custom_call.1} parent=1 // pred_check_branch
      %166 = sbr.rel (0) target = $region29
    $region28: #{tpu_custom_call.1} parent=1 // pred_region
      %167 = dma.done [#allocation4], 128
    $region29: #{tpu_custom_call.1} parent=1 // pred_fallthru
      _
    %168 = vsyncpa [#allocation3], 1
    %169 = vsyncpa [#allocation6], 1
    %170 = vsyncpa [#allocation4], 1

</llo_original>
